<compile_context>
chip_gen: v7x
topology: tpu7x:2x2x1
jax: 0.10.0
libtpu: 0.0.40
codegen_flags: <defaults>
</compile_context>

<pallas_src>
import jax
import jax.numpy as jnp
from jax import lax
from jax.experimental import pallas as pl
from jax.experimental.pallas import tpu as pltpu


def _round_up(x, m):
    return ((x + m - 1) // m) * m


def _decoder_mlp_kernel(zu_ref, zr_ref, w1u_ref, w1r_ref, b1_ref,
                        w2_ref, b2_ref, w3_ref, b3_ref, o_ref):
    """One edge tile.

    zu/zr: (TE, H) bf16 edge features; w1u/w1r/w2: (H, H) f32;
    b1/b2/w3: (1, H) f32; b3: (1, 1) f32; o: (1, TE) f32 (lane-dense row).
    """
    zu = zu_ref[...].astype(jnp.float32)
    zr = zr_ref[...].astype(jnp.float32)

    # lin1 on the split halves (no concat): h1 = zu @ W1u + zr @ W1r + b1.
    h1 = (jnp.dot(zu, w1u_ref[...], preferred_element_type=jnp.float32)
          + jnp.dot(zr, w1r_ref[...], preferred_element_type=jnp.float32)
          + b1_ref[...])
    h1 = jnp.maximum(h1, 0.0)

    # lin2
    h2 = (jnp.dot(h1, w2_ref[...], preferred_element_type=jnp.float32)
          + b2_ref[...])
    h2 = jnp.maximum(h2, 0.0)

    # lin3 (single output feature): contract H between the (1, H) weight row
    # and the (TE, H) activations so the MXU emits a lane-dense (1, TE) row
    # directly; a (TE, 1) column output would lower to masked 1-lane stores.
    out_row = lax.dot_general(
        w3_ref[...], h2,
        dimension_numbers=(((1,), (1,)), ((), ())),
        preferred_element_type=jnp.float32)            # (1, TE)
    o_ref[...] = (out_row + b3_ref[...]).astype(o_ref.dtype)


def _choose_tile(E, H, tile_e):
    """Edge-tile size: 32-aligned, VMEM-budgeted, >= 2 grid steps if big."""
    align = 32                       # bf16 native sublane tile is 16; use 32.
    e_al = _round_up(max(E, 1), align)
    tile = min(_round_up(tile_e, align), e_al)

    # VMEM budget: 2 edge inputs x 2 pipeline buffers x (tile, lane-padded H)
    # bf16; keep under ~24 MiB so the whole call fits the 32 MiB scoped limit.
    lane_h = max(_round_up(H, 128), 128)
    max_tile = ((24 << 20) // (2 * 2 * lane_h * 2) // align) * align
    tile = max(align, min(tile, max_tile))

    # Keep at least 2 grid steps on non-tiny problems so the "parallel" axis
    # can actually shard work across TensorCores.
    if e_al >= 2048 and pl.cdiv(e_al, tile) < 2:
        tile = max(align, _round_up(pl.cdiv(e_al, 2), align))
    return tile


def decoder_mlp(zu, zr, params, *, tile_e=8192):
    """zu, zr: (E, H) gathered node embeddings. Returns (E,) f32 scores."""
    E, H = zu.shape
    assert zr.shape == (E, H)

    tile = _choose_tile(E, H, tile_e)
    E_pad = _round_up(E, tile)
    if E_pad != E:  # fallback only; the forward wrapper pads indices instead
        pad = E_pad - E
        zu = jnp.pad(zu, ((0, pad), (0, 0)))
        zr = jnp.pad(zr, ((0, pad), (0, 0)))
    n_tiles = E_pad // tile

    # Dominant HBM streams in bf16; weights/biases stay f32 (tiny, VMEM
    # resident), accumulation is f32 -> only input quantization error.
    zu_b = zu.astype(jnp.bfloat16)
    zr_b = zr.astype(jnp.bfloat16)
    w1u = params["w1"][:H, :].astype(jnp.float32)        # (H, H)
    w1r = params["w1"][H:, :].astype(jnp.float32)        # (H, H)
    w2 = params["w2"].astype(jnp.float32)                # (H, H)
    b1 = params["b1"].reshape(1, H).astype(jnp.float32)
    b2 = params["b2"].reshape(1, H).astype(jnp.float32)
    w3_row = params["w3"].reshape(1, H).astype(jnp.float32)
    b3 = params["b3"].reshape(1, 1).astype(jnp.float32)

    full = lambda i: (0, 0)
    edge = lambda i: (i, 0)

    out = pl.pallas_call(
        _decoder_mlp_kernel,
        out_shape=jax.ShapeDtypeStruct((n_tiles, tile), jnp.float32),
        grid_spec=pltpu.PrefetchScalarGridSpec(
            num_scalar_prefetch=0,
            grid=(n_tiles,),
            in_specs=[
                pl.BlockSpec((tile, H), edge),   # z_user tile   (bf16 stream)
                pl.BlockSpec((tile, H), edge),   # z_rest tile   (bf16 stream)
                pl.BlockSpec((H, H), full),      # W1_u
                pl.BlockSpec((H, H), full),      # W1_r
                pl.BlockSpec((1, H), full),      # b1
                pl.BlockSpec((H, H), full),      # W2
                pl.BlockSpec((1, H), full),      # b2
                pl.BlockSpec((1, H), full),      # w3 row
                pl.BlockSpec((1, 1), full),      # b3
            ],
            # Lane-dense (1, tile) row per grid step (no masked column stores).
            out_specs=pl.BlockSpec((1, tile), edge),
        ),
        compiler_params=pltpu.CompilerParams(
            dimension_semantics=("parallel",),
            vmem_limit_bytes=32 << 20),
    )(zu_b, zr_b, w1u, w1r, b1, w2, b2, w3_row, b3)

    return out.reshape(-1)[:E]


def single_edge_decoder_forward(z_dict, edge_label_index, params, *, tile_e=8192):
    """Full SingleEdgeDecoder.forward. Returns shape (E,)."""
    row, col = edge_label_index
    E = row.shape[0]
    H = z_dict["user"].shape[-1]

    # Pad the cheap int32 index vectors (clamped to node 0) up to a tile
    # multiple, so the gathered feature arrays never need an extra pad pass.
    tile = _choose_tile(E, H, tile_e)
    E_pad = _round_up(E, tile)
    row_p = jnp.pad(row.astype(jnp.int32), (0, E_pad - E))
    col_p = jnp.pad(col.astype(jnp.int32), (0, E_pad - E))

    # Cast the node tables to bf16 once (before the gather) so the gather
    # writes bf16 directly; the gather itself stays plain-JAX index plumbing.
    zu = z_dict["user"].astype(jnp.bfloat16)[row_p]
    zr = z_dict["restaurant"].astype(jnp.bfloat16)[col_p]

    return decoder_mlp(zu, zr, params, tile_e=tile)[:E]


def init_params(key, hidden_channels):
    """PyTorch-Linear-style init (uniform +-1/sqrt(fan_in)).

    Weights stored as (in, out) so the kernel computes y = x @ W + b,
    equivalent to PyTorch's x @ W.T + b with W of shape (out, in).
    """
    H = hidden_channels
    ks = jax.random.split(key, 6)

    def uni(k, shape, fan_in):
        bound = 1.0 / jnp.sqrt(fan_in)
        return jax.random.uniform(k, shape, jnp.float32, -bound, bound)

    return {
        "w1": uni(ks[0], (2 * H, H), 2 * H),
        "b1": uni(ks[1], (1, H), 2 * H),
        "w2": uni(ks[2], (H, H), H),
        "b2": uni(ks[3], (1, H), H),
        "w3": uni(ks[4], (H, 1), H),
        "b3": uni(ks[5], (1, 1), H),
    }


def _reference_forward(z_dict, edge_label_index, params):
    row, col = edge_label_index
    z = jnp.concatenate(
        [z_dict["user"][row], z_dict["restaurant"][col]], axis=-1)
    h = jnp.maximum(z @ params["w1"] + params["b1"], 0.0)
    h = jnp.maximum(h @ params["w2"] + params["b2"], 0.0)
    return (h @ params["w3"] + params["b3"]).reshape(-1)


if __name__ == "__main__":
    key = jax.random.PRNGKey(0)
    k_u, k_r, k_row, k_col, k_p, k_row2, k_col2 = jax.random.split(key, 7)

    hidden_channels = 32
    num_users, num_restaurants = 10, 12

    z_dict = {
        "user": jax.random.normal(k_u, (num_users, hidden_channels),
                                  jnp.float32),
        "restaurant": jax.random.normal(k_r, (num_restaurants, hidden_channels),
                                        jnp.float32),
    }
    params = init_params(k_p, hidden_channels)

    # Case 1: small ragged edge count (exercises wrapper-side index padding).
    num_edges = 19
    edge_label_index = (
        jax.random.randint(k_row, (num_edges,), 0, num_users),
        jax.random.randint(k_col, (num_edges,), 0, num_restaurants),
    )
    out = single_edge_decoder_forward(z_dict, edge_label_index, params)
    out = jax.block_until_ready(out)
    ref = _reference_forward(z_dict, edge_label_index, params)
    assert out.shape == (num_edges,)
    assert jnp.allclose(out, ref, atol=3e-2, rtol=3e-2), (
        f"case1 max abs err {jnp.max(jnp.abs(out - ref))}")

    # Case 2: multi-tile grid (parallel axis, lane-dense multi-row output).
    num_edges2 = 700
    edge_label_index2 = (
        jax.random.randint(k_row2, (num_edges2,), 0, num_users),
        jax.random.randint(k_col2, (num_edges2,), 0, num_restaurants),
    )
    out2 = single_edge_decoder_forward(z_dict, edge_label_index2, params,
                                       tile_e=256)
    out2 = jax.block_until_ready(out2)
    ref2 = _reference_forward(z_dict, edge_label_index2, params)
    assert out2.shape == (num_edges2,)
    assert jnp.allclose(out2, ref2, atol=3e-2, rtol=3e-2), (
        f"case2 max abs err {jnp.max(jnp.abs(out2 - ref2))}")

    print("KERNEL_OK")
</pallas_src>

<mosaic_0001>
module attributes {stable_mosaic.version = 11 : i64} {
  func.func @_decoder_mlp_kernel(%arg0: i32, %arg1: memref<32x32xbf16, #tpu.memory_space<vmem>>, %arg2: memref<32x32xbf16, #tpu.memory_space<vmem>>, %arg3: memref<32x32xf32, #tpu.memory_space<vmem>>, %arg4: memref<32x32xf32, #tpu.memory_space<vmem>>, %arg5: memref<1x32xf32, #tpu.memory_space<vmem>>, %arg6: memref<32x32xf32, #tpu.memory_space<vmem>>, %arg7: memref<1x32xf32, #tpu.memory_space<vmem>>, %arg8: memref<1x32xf32, #tpu.memory_space<vmem>>, %arg9: memref<1x1xf32, #tpu.memory_space<vmem>>, %arg10: memref<1x32xf32, #tpu.memory_space<vmem>>) attributes {dimension_semantics = [#tpu.dimension_semantics<parallel>], iteration_bounds = array<i64: 1>, scalar_prefetch = 0 : i64, scratch_operands = 0 : i64, tpu.core_type = #tpu.core_type<tc>, window_params = [{transform_indices = @transform_0, window_bounds = array<i64: 32, 32>}, {transform_indices = @transform_1, window_bounds = array<i64: 32, 32>}, {pipeline_mode = #tpu.pipeline_mode<synchronous>, transform_indices = @transform_2, window_bounds = array<i64: 32, 32>}, {pipeline_mode = #tpu.pipeline_mode<synchronous>, transform_indices = @transform_3, window_bounds = array<i64: 32, 32>}, {pipeline_mode = #tpu.pipeline_mode<synchronous>, transform_indices = @transform_4, window_bounds = array<i64: 1, 32>}, {pipeline_mode = #tpu.pipeline_mode<synchronous>, transform_indices = @transform_5, window_bounds = array<i64: 32, 32>}, {pipeline_mode = #tpu.pipeline_mode<synchronous>, transform_indices = @transform_6, window_bounds = array<i64: 1, 32>}, {pipeline_mode = #tpu.pipeline_mode<synchronous>, transform_indices = @transform_7, window_bounds = array<i64: 1, 32>}, {pipeline_mode = #tpu.pipeline_mode<synchronous>, transform_indices = @transform_8, window_bounds = array<i64: 1, 1>}, {transform_indices = @transform_9, window_bounds = array<i64: 1, 32>}]} {
    %c0 = arith.constant 0 : index
    %c0_0 = arith.constant 0 : index
    %0 = vector.load %arg1[%c0, %c0_0] : memref<32x32xbf16, #tpu.memory_space<vmem>>, vector<32x32xbf16>
    %1 = arith.extf %0 : vector<32x32xbf16> to vector<32x32xf32>
    %c0_1 = arith.constant 0 : index
    %c0_2 = arith.constant 0 : index
    %2 = vector.load %arg2[%c0_1, %c0_2] : memref<32x32xbf16, #tpu.memory_space<vmem>>, vector<32x32xbf16>
    %3 = arith.extf %2 : vector<32x32xbf16> to vector<32x32xf32>
    %c0_3 = arith.constant 0 : index
    %c0_4 = arith.constant 0 : index
    %4 = vector.load %arg3[%c0_3, %c0_4] : memref<32x32xf32, #tpu.memory_space<vmem>>, vector<32x32xf32>
    %cst = arith.constant dense<0.000000e+00> : vector<32x32xf32>
    %5 = tpu.matmul %1, %4, %cst {dimension_numbers = #tpu.dot_dimension_numbers<[1], [0], [0], [1], [0, 0, 1, 1], [], []>} : vector<32x32xf32>, vector<32x32xf32>, vector<32x32xf32> -> vector<32x32xf32>
    %c0_5 = arith.constant 0 : index
    %c0_6 = arith.constant 0 : index
    %6 = vector.load %arg4[%c0_5, %c0_6] : memref<32x32xf32, #tpu.memory_space<vmem>>, vector<32x32xf32>
    %cst_7 = arith.constant dense<0.000000e+00> : vector<32x32xf32>
    %7 = tpu.matmul %3, %6, %cst_7 {dimension_numbers = #tpu.dot_dimension_numbers<[1], [0], [0], [1], [0, 0, 1, 1], [], []>} : vector<32x32xf32>, vector<32x32xf32>, vector<32x32xf32> -> vector<32x32xf32>
    %8 = arith.addf %5, %7 : vector<32x32xf32>
    %c0_8 = arith.constant 0 : index
    %c0_9 = arith.constant 0 : index
    %9 = vector.load %arg5[%c0_8, %c0_9] : memref<1x32xf32, #tpu.memory_space<vmem>>, vector<1x32xf32>
    %10 = vector.broadcast %9 : vector<1x32xf32> to vector<32x32xf32>
    %11 = arith.addf %8, %10 : vector<32x32xf32>
    %cst_10 = arith.constant 0.000000e+00 : f32
    %12 = vector.broadcast %cst_10 : f32 to vector<32x32xf32>
    %13 = arith.maximumf %11, %12 : vector<32x32xf32>
    %c0_11 = arith.constant 0 : index
    %c0_12 = arith.constant 0 : index
    %14 = vector.load %arg6[%c0_11, %c0_12] : memref<32x32xf32, #tpu.memory_space<vmem>>, vector<32x32xf32>
    %cst_13 = arith.constant dense<0.000000e+00> : vector<32x32xf32>
    %15 = tpu.matmul %13, %14, %cst_13 {dimension_numbers = #tpu.dot_dimension_numbers<[1], [0], [0], [1], [0, 0, 1, 1], [], []>} : vector<32x32xf32>, vector<32x32xf32>, vector<32x32xf32> -> vector<32x32xf32>
    %c0_14 = arith.constant 0 : index
    %c0_15 = arith.constant 0 : index
    %16 = vector.load %arg7[%c0_14, %c0_15] : memref<1x32xf32, #tpu.memory_space<vmem>>, vector<1x32xf32>
    %17 = vector.broadcast %16 : vector<1x32xf32> to vector<32x32xf32>
    %18 = arith.addf %15, %17 : vector<32x32xf32>
    %cst_16 = arith.constant 0.000000e+00 : f32
    %19 = vector.broadcast %cst_16 : f32 to vector<32x32xf32>
    %20 = arith.maximumf %18, %19 : vector<32x32xf32>
    %c0_17 = arith.constant 0 : index
    %c0_18 = arith.constant 0 : index
    %21 = vector.load %arg8[%c0_17, %c0_18] : memref<1x32xf32, #tpu.memory_space<vmem>>, vector<1x32xf32>
    %cst_19 = arith.constant dense<0.000000e+00> : vector<1x32xf32>
    %22 = tpu.matmul %21, %20, %cst_19 {dimension_numbers = #tpu.dot_dimension_numbers<[1], [1], [0], [0], [0, 0, 1, 0], [], []>} : vector<1x32xf32>, vector<32x32xf32>, vector<1x32xf32> -> vector<1x32xf32>
    %c0_20 = arith.constant 0 : index
    %c0_21 = arith.constant 0 : index
    %23 = vector.load %arg9[%c0_20, %c0_21] : memref<1x1xf32, #tpu.memory_space<vmem>>, vector<1x1xf32>
    %24 = vector.broadcast %23 : vector<1x1xf32> to vector<1x32xf32>
    %25 = arith.addf %22, %24 : vector<1x32xf32>
    %c0_22 = arith.constant 0 : index
    %c0_23 = arith.constant 0 : index
    %26 = vector.load %arg10[%c0_22, %c0_23] : memref<1x32xf32, #tpu.memory_space<vmem>>, vector<1x32xf32>
    tpu.vector_store %arg10[%c0_22, %c0_23], %25 {strides = array<i32>} : memref<1x32xf32, #tpu.memory_space<vmem>>, vector<1x32xf32>,
    return
  }
  func.func @transform_0(%arg0: i32) -> (i32, i32) {
    %c0_i32 = arith.constant 0 : i32
    %c0_i32_0 = arith.constant 0 : i32
    return %arg0, %c0_i32 : i32, i32
  }
  func.func @transform_1(%arg0: i32) -> (i32, i32) {
    %c0_i32 = arith.constant 0 : i32
    %c0_i32_0 = arith.constant 0 : i32
    return %arg0, %c0_i32 : i32, i32
  }
  func.func @transform_2(%arg0: i32) -> (i32, i32) {
    %c0_i32 = arith.constant 0 : i32
    %c0_i32_0 = arith.constant 0 : i32
    %c0_i32_1 = arith.constant 0 : i32
    return %c0_i32, %c0_i32_0 : i32, i32
  }
  func.func @transform_3(%arg0: i32) -> (i32, i32) {
    %c0_i32 = arith.constant 0 : i32
    %c0_i32_0 = arith.constant 0 : i32
    %c0_i32_1 = arith.constant 0 : i32
    return %c0_i32, %c0_i32_0 : i32, i32
  }
  func.func @transform_4(%arg0: i32) -> (i32, i32) {
    %c0_i32 = arith.constant 0 : i32
    %c0_i32_0 = arith.constant 0 : i32
    %c0_i32_1 = arith.constant 0 : i32
    return %c0_i32, %c0_i32_0 : i32, i32
  }
  func.func @transform_5(%arg0: i32) -> (i32, i32) {
    %c0_i32 = arith.constant 0 : i32
    %c0_i32_0 = arith.constant 0 : i32
    %c0_i32_1 = arith.constant 0 : i32
    return %c0_i32, %c0_i32_0 : i32, i32
  }
  func.func @transform_6(%arg0: i32) -> (i32, i32) {
    %c0_i32 = arith.constant 0 : i32
    %c0_i32_0 = arith.constant 0 : i32
    %c0_i32_1 = arith.constant 0 : i32
    return %c0_i32, %c0_i32_0 : i32, i32
  }
  func.func @transform_7(%arg0: i32) -> (i32, i32) {
    %c0_i32 = arith.constant 0 : i32
    %c0_i32_0 = arith.constant 0 : i32
    %c0_i32_1 = arith.constant 0 : i32
    return %c0_i32, %c0_i32_0 : i32, i32
  }
  func.func @transform_8(%arg0: i32) -> (i32, i32) {
    %c0_i32 = arith.constant 0 : i32
    %c0_i32_0 = arith.constant 0 : i32
    %c0_i32_1 = arith.constant 0 : i32
    return %c0_i32, %c0_i32_0 : i32, i32
  }
  func.func @transform_9(%arg0: i32) -> (i32, i32) {
    %c0_i32 = arith.constant 0 : i32
    %c0_i32_0 = arith.constant 0 : i32
    return %arg0, %c0_i32 : i32, i32
  }
}

</mosaic_0001>

<llo_original>
// kernel: tpu_custom_call.1
$region0: #{tpu_custom_call.1}
  #allocation0 [shape = 'u32[]', space=smem, size = 0x4, offset = 0x4, fixed_abs, tag = 'smem constant byte address 0x4 - core index']
  #allocation1 [shape = 'u32[144,128]{1,0:T(1,128)}', space=vmem, size = 0x12000, scoped, tag = 'internal scratch']
  #allocation2 [shape = 'f32[1,1]{1,0:T(1,128)S(1)}', space=vmem, size = 0x200, scoped, tag = 'scoped memory for tpu_custom_call.1']
  %s0 = inlined_call_operand.hbm [shape: bf16[32,32], index: 0, kind: input, shape index: {}]
  %s1 = inlined_call_operand.hbm [shape: bf16[32,32], index: 1, kind: input, shape index: {}]
  %s2 = inlined_call_operand.hbm [shape: f32[32,32], index: 2, kind: input, shape index: {}]
  %s3 = inlined_call_operand.hbm [shape: f32[32,32], index: 3, kind: input, shape index: {}]
  %s4 = inlined_call_operand.vmem [shape: f32[1,32], index: 4, kind: input, shape index: {}]
  %s5 = inlined_call_operand.hbm [shape: f32[32,32], index: 5, kind: input, shape index: {}]
  %s6 = inlined_call_operand.vmem [shape: f32[1,32], index: 6, kind: input, shape index: {}]
  %s7 = inlined_call_operand.vmem [shape: f32[1,32], index: 7, kind: input, shape index: {}]
  %s8 = inlined_call_operand.<no memory space> [shape: f32[1,1], index: 8, kind: input, shape index: {}]
  %s9 = inlined_call_operand.hbm [shape: f32[1,32], index: 9, kind: output, shape index: {}]
  %s10 = sld [smem:[#allocation0]]
  $region66: #{tpu_custom_call.1} parent=0
    _
  %s12 = ssub.s32 1, %s10
  %s13 = scalar_select 0, %s12, %s10
  %v14 = vstv %s8
  %15 = vst [vmem:[#allocation2] sm:$0x1] %v14
  $region1: #{tpu_custom_call.1} parent=0
    #allocation3 [shape = 'u8[8192]{0}', space=vmem, size = 0x2000, scoped, tag = 'input window, operand 0, single buffered']
    #allocation4 [shape = 's32[1]{0}', space=sflag, size = 0x4, scoped, tag = 'scoped memory for tpu_custom_call.1']
    #allocation5 [shape = 's32[1]{0}', space=sflag, size = 0x4, scoped, tag = 'scoped memory for tpu_custom_call.1']
    #allocation6 [shape = 'u8[8192]{0}', space=vmem, size = 0x2000, scoped, tag = 'input window, operand 1, single buffered']
    #allocation7 [shape = 's32[1]{0}', space=sflag, size = 0x4, scoped, tag = 'scoped memory for tpu_custom_call.1']
    #allocation8 [shape = 'u8[16384]{0}', space=vmem, size = 0x4000, scoped, tag = 'input window, operand 2, single buffered']
    #allocation9 [shape = 'u8[16384]{0}', space=vmem, size = 0x4000, scoped, tag = 'input window, operand 3, single buffered']
    #allocation10 [shape = 's32[1]{0}', space=sflag, size = 0x4, scoped, tag = 'scoped memory for tpu_custom_call.1']
    #allocation11 [shape = 'u8[16384]{0}', space=vmem, size = 0x4000, scoped, tag = 'input window, operand 5, single buffered']
    #allocation12 [shape = 'u8[512]{0}', space=vmem, size = 0x400, scoped, tag = 'output window, operand 0, single buffered']
    %16 = vsyncpa [#allocation4], 0
    %17 = vsyncpa [#allocation7], 0
    %18 = vsyncpa [#allocation10], 0
    %19 = vsyncpa [#allocation5], 0
    // Predicated region
    $region2: #{tpu_custom_call.1} parent=1 // pred_check
      _
    $region3: #{tpu_custom_call.1} parent=1 // pred_check_branch
      %21 = sbr.rel (0) target = $region5
    $region4: #{tpu_custom_call.1} parent=1 // pred_region
      %s23 = ssub.s32 256, 256
      %24 = vsyncadd [#allocation4], %s23
      %s25 = sshll.u32 [#allocation3], 4
      %s26 = int_to_ptr.vmem [resolvable:$true] %s25
      %31 = dma.hbm_to_vmem [thread:$0]  %s0, 256, %s26, [#allocation4], 64, 64, 4
    $region5: #{tpu_custom_call.1} parent=1 // pred_fallthru
      _
    // Predicated region
    $region6: #{tpu_custom_call.1} parent=1 // pred_check
      _
    $region7: #{tpu_custom_call.1} parent=1 // pred_check_branch
      %33 = sbr.rel (0) target = $region9
    $region8: #{tpu_custom_call.1} parent=1 // pred_region
      %s35 = ssub.s32 256, 256
      %36 = vsyncadd [#allocation7], %s35
      %s37 = sshll.u32 [#allocation6], 4
      %s38 = int_to_ptr.vmem [resolvable:$true] %s37
      %43 = dma.hbm_to_vmem [thread:$0]  %s1, 256, %s38, [#allocation7], 64, 64, 4
    $region9: #{tpu_custom_call.1} parent=1 // pred_fallthru
      _
    // Predicated region
    $region10: #{tpu_custom_call.1} parent=1 // pred_check
      _
    $region11: #{tpu_custom_call.1} parent=1 // pred_check_branch
      %45 = sbr.rel (0) target = $region13
    $region12: #{tpu_custom_call.1} parent=1 // pred_region
      %s47 = ssub.s32 512, 512
      %48 = vsyncadd [#allocation7], %s47
      %s49 = sshll.u32 [#allocation8], 4
      %s50 = int_to_ptr.vmem [resolvable:$true] %s49
      %55 = dma.hbm_to_vmem [thread:$0]  %s2, 512, %s50, [#allocation7], 128, 128, 8
    $region13: #{tpu_custom_call.1} parent=1 // pred_fallthru
      _
    // Predicated region
    $region14: #{tpu_custom_call.1} parent=1 // pred_check
      _
    $region15: #{tpu_custom_call.1} parent=1 // pred_check_branch
      %57 = sbr.rel (0) target = $region17
    $region16: #{tpu_custom_call.1} parent=1 // pred_region
      %s59 = ssub.s32 512, 512
      %60 = vsyncadd [#allocation10], %s59
      %s61 = sshll.u32 [#allocation9], 4
      %s62 = int_to_ptr.vmem [resolvable:$true] %s61
      %67 = dma.hbm_to_vmem [thread:$0]  %s3, 512, %s62, [#allocation10], 128, 128, 8
    $region17: #{tpu_custom_call.1} parent=1 // pred_fallthru
      _
    // Predicated region
    $region18: #{tpu_custom_call.1} parent=1 // pred_check
      _
    $region19: #{tpu_custom_call.1} parent=1 // pred_check_branch
      %69 = sbr.rel (0) target = $region21
    $region20: #{tpu_custom_call.1} parent=1 // pred_region
      _
    $region21: #{tpu_custom_call.1} parent=1 // pred_fallthru
      _
    // Predicated region
    $region22: #{tpu_custom_call.1} parent=1 // pred_check
      _
    $region23: #{tpu_custom_call.1} parent=1 // pred_check_branch
      %71 = sbr.rel (0) target = $region25
    $region24: #{tpu_custom_call.1} parent=1 // pred_region
      %s73 = ssub.s32 512, 512
      %74 = vsyncadd [#allocation10], %s73
      %s75 = sshll.u32 [#allocation11], 4
      %s76 = int_to_ptr.vmem [resolvable:$true] %s75
      %81 = dma.hbm_to_vmem [thread:$0]  %s5, 512, %s76, [#allocation10], 128, 128, 8
    $region25: #{tpu_custom_call.1} parent=1 // pred_fallthru
      _
    // Predicated region
    $region26: #{tpu_custom_call.1} parent=1 // pred_check
      _
    $region27: #{tpu_custom_call.1} parent=1 // pred_check_branch
      %83 = sbr.rel (0) target = $region29
    $region28: #{tpu_custom_call.1} parent=1 // pred_region
      _
    $region29: #{tpu_custom_call.1} parent=1 // pred_fallthru
      _
    // Predicated region
    $region30: #{tpu_custom_call.1} parent=1 // pred_check
      _
    $region31: #{tpu_custom_call.1} parent=1 // pred_check_branch
      %85 = sbr.rel (0) target = $region33
    $region32: #{tpu_custom_call.1} parent=1 // pred_region
      _
    $region33: #{tpu_custom_call.1} parent=1 // pred_fallthru
      _
    // Predicated region
    $region34: #{tpu_custom_call.1} parent=1 // pred_check
      _
    $region35: #{tpu_custom_call.1} parent=1 // pred_check_branch
      %87 = sbr.rel (0) target = $region37
    $region36: #{tpu_custom_call.1} parent=1 // pred_region
      _
    $region37: #{tpu_custom_call.1} parent=1 // pred_fallthru
      _
    // Predicated region
    $region38: #{tpu_custom_call.1} parent=1 // pred_check
      _
    $region39: #{tpu_custom_call.1} parent=1 // pred_check_branch
      %89 = sbr.rel (0) target = $region41
    $region40: #{tpu_custom_call.1} parent=1 // pred_region
      %90 = dma.done [#allocation4], 256
    $region41: #{tpu_custom_call.1} parent=1 // pred_fallthru
      _
    // Predicated region
    $region42: #{tpu_custom_call.1} parent=1 // pred_check
      _
    $region43: #{tpu_custom_call.1} parent=1 // pred_check_branch
      %92 = sbr.rel (0) target = $region45
    $region44: #{tpu_custom_call.1} parent=1 // pred_region
      %93 = dma.done [#allocation7], 256
    $region45: #{tpu_custom_call.1} parent=1 // pred_fallthru
      _
    // Predicated region
    $region46: #{tpu_custom_call.1} parent=1 // pred_check
      _
    $region47: #{tpu_custom_call.1} parent=1 // pred_check_branch
      %95 = sbr.rel (0) target = $region49
    $region48: #{tpu_custom_call.1} parent=1 // pred_region
      %96 = dma.done [#allocation7], 512
    $region49: #{tpu_custom_call.1} parent=1 // pred_fallthru
      _
    // Predicated region
    $region50: #{tpu_custom_call.1} parent=1 // pred_check
      _
    $region51: #{tpu_custom_call.1} parent=1 // pred_check_branch
      %98 = sbr.rel (0) target = $region53
    $region52: #{tpu_custom_call.1} parent=1 // pred_region
      %99 = dma.done [#allocation10], 512
    $region53: #{tpu_custom_call.1} parent=1 // pred_fallthru
      _
    // Predicated region
    $region54: #{tpu_custom_call.1} parent=1 // pred_check
      _
    $region55: #{tpu_custom_call.1} parent=1 // pred_check_branch
      %101 = sbr.rel (0) target = $region57
    $region56: #{tpu_custom_call.1} parent=1 // pred_region
      %102 = dma.done [#allocation10], 512
    $region57: #{tpu_custom_call.1} parent=1 // pred_fallthru
      _
    %v103 = vld [vmem:[#allocation3] sm:$0xf]
    %v104 = vld [vmem:[#allocation3 + $0x4] sm:$0xf]
    %v105 = vld [vmem:[#allocation3 + $0x8] sm:$0xf]
    %v106 = vld [vmem:[#allocation3 + $0xc] sm:$0xf]
    %v107 = vunpack.c.l.bf16 %v103
    %v108 = vunpack.c.l.bf16 %v104
    %v109 = vunpack.c.l.bf16 %v105
    %v110 = vunpack.c.l.bf16 %v106
    %v111 = vld [vmem:[#allocation6] sm:$0xf]
    %v112 = vld [vmem:[#allocation6 + $0x4] sm:$0xf]
    %v113 = vld [vmem:[#allocation6 + $0x8] sm:$0xf]
    %v114 = vld [vmem:[#allocation6 + $0xc] sm:$0xf]
    %v115 = vunpack.c.l.bf16 %v111
    %v116 = vunpack.c.l.bf16 %v112
    %v117 = vunpack.c.l.bf16 %v113
    %v118 = vunpack.c.l.bf16 %v114
    %v119 = vld [vmem:[#allocation8] sm:$0xff]
    %v120 = vld [vmem:[#allocation8 + $0x8] sm:$0xff]
    %v121 = vld [vmem:[#allocation8 + $0x10] sm:$0xff]
    %v122 = vld [vmem:[#allocation8 + $0x18] sm:$0xff]
    %v123 = vld [vmem:[#allocation9] sm:$0xff]
    %v124 = vld [vmem:[#allocation9 + $0x8] sm:$0xff]
    %v125 = vld [vmem:[#allocation9 + $0x10] sm:$0xff]
    %v126 = vld [vmem:[#allocation9 + $0x18] sm:$0xff]
    %vm127 = vcmask 261120
    %v129 = vsel %vm127, %v115, 0
    %v132 = vsel %vm127, %v116, 0
    %v135 = vsel %vm127, %v117, 0
    %v138 = vsel %vm127, %v118, 0
    %140 = vmatprep.subr.mxu0 0.0
    %141 = vmatpush1.msra.mxu0 %v123
    %142 = vmatprep.subr.mxu0 0.0
    %143 = vmatpush1.msra.mxu0 %v124
    %144 = vmatprep.subr.mxu0 0.0
    %145 = vmatpush1.msra.mxu0 %v125
    %146 = vmatprep.subr.mxu0 0.0
    %147 = vmatpush1.msra.mxu0 %v126
    %148 = vmatprep.subr.mxu0 0.0
    %149 = vmatpush1.msra.mxu0 0.0
    %150 = vmatprep.subr.mxu0 0.0
    %151 = vmatpush1.msra.mxu0 0.0
    %152 = vmatprep.subr.mxu0 0.0
    %153 = vmatpush1.msra.mxu0 0.0
    %154 = vmatprep.subr.mxu0 0.0
    %155 = vmatpush1.msra.mxu0 0.0
    %156 = vmatprep.subr.mxu0 0.0
    %157 = vmatpush1.msra.mxu0 0.0
    %158 = vmatprep.subr.mxu0 0.0
    %159 = vmatpush1.msra.mxu0 0.0
    %160 = vmatprep.subr.mxu0 0.0
    %161 = vmatpush1.msra.mxu0 0.0
    %162 = vmatprep.subr.mxu0 0.0
    %163 = vmatpush1.msra.mxu0 0.0
    %164 = vmatprep.subr.mxu0 0.0
    %165 = vmatpush1.msra.mxu0 0.0
    %166 = vmatprep.subr.mxu0 0.0
    %167 = vmatpush1.msra.mxu0 0.0
    %168 = vmatprep.subr.mxu0 0.0
    %169 = vmatpush1.msra.mxu0 0.0
    %170 = vmatprep.subr.mxu0 0.0
    %171 = vmatpush1.msra.mxu0 0.0
    %172 = vmatprep.subr.mxu0 0.0
    %173 = vmatpush1.msra.mxu0 0.0
    %174 = vmatprep.subr.mxu0 0.0
    %175 = vmatpush1.msra.mxu0 0.0
    %176 = vmatprep.subr.mxu0 0.0
    %177 = vmatpush1.msra.mxu0 0.0
    %178 = vmatprep.subr.mxu0 0.0
    %179 = vmatpush1.msra.mxu0 0.0
    %180 = vmatprep.subr.mxu0 0.0
    %181 = vmatpush1.msra.mxu0 0.0
    %182 = vmatprep.subr.mxu0 0.0
    %183 = vmatpush1.msra.mxu0 0.0
    %184 = vmatprep.subr.mxu0 0.0
    %185 = vmatpush1.msra.mxu0 0.0
    %186 = vmatprep.subr.mxu0 0.0
    %187 = vmatpush1.msra.mxu0 0.0
    %188 = vmatprep.subr.mxu0 0.0
    %189 = vmatpush1.msra.mxu0 0.0
    %190 = vmatprep.subr.mxu0 0.0
    %191 = vmatpush1.msra.mxu0 0.0
    %192 = vmatprep.subr.mxu0 0.0
    %193 = vmatpush1.msra.mxu0 0.0
    %194 = vmatprep.subr.mxu0 0.0
    %195 = vmatpush1.msra.mxu0 0.0
    %196 = vmatprep.subr.mxu0 0.0
    %197 = vmatpush1.msra.mxu0 0.0
    %198 = vmatprep.subr.mxu0 0.0
    %199 = vmatpush1.msra.mxu0 0.0
    %200 = vmatprep.subr.mxu0 0.0
    %201 = vmatpush1.msra.mxu0 0.0
    %202 = vmatprep.subr.mxu0 0.0
    %203 = vmatpush1.msra.mxu0 0.0
    %204 = vmatprep.mubr.f32.mxu0 0.0
    %205 = vmatmul.mubr.f32.gmra.mrb[0].mxu0 %v129
    %v206 = vpop.f32.mrb[0].mxu0
    %v207 = vadd.f32 0.0, %v206
    %v208 = vpop.f32.mrb[0].mxu0
    %209 = vmatprep.mubr.f32.mxu0 0.0
    %210 = vmatmul.mubr.f32.gmra.mrb[0].mxu0 %v132
    %v211 = vpop.f32.mrb[0].mxu0
    %v212 = vadd.f32 0.0, %v211
    %v213 = vpop.f32.mrb[0].mxu0
    %214 = vmatprep.mubr.f32.mxu0 0.0
    %215 = vmatmul.mubr.f32.gmra.mrb[0].mxu0 %v135
    %v216 = vpop.f32.mrb[0].mxu0
    %v217 = vadd.f32 0.0, %v216
    %v218 = vpop.f32.mrb[0].mxu0
    %219 = vmatprep.mubr.f32.mxu0 0.0
    %220 = vmatmul.mubr.f32.gmra.mrb[0].mxu0 %v138
    %v221 = vpop.f32.mrb[0].mxu0
    %v222 = vadd.f32 0.0, %v221
    %v223 = vpop.f32.mrb[0].mxu0
    %224 = vdwg.mxu0
    %v226 = vsel %vm127, %v107, 0
    %v229 = vsel %vm127, %v108, 0
    %v232 = vsel %vm127, %v109, 0
    %v235 = vsel %vm127, %v110, 0
    %237 = vmatprep.subr.mxu0 0.0
    %238 = vmatpush1.msra.mxu0 %v119
    %239 = vmatprep.subr.mxu0 0.0
    %240 = vmatpush1.msra.mxu0 %v120
    %241 = vmatprep.subr.mxu0 0.0
    %242 = vmatpush1.msra.mxu0 %v121
    %243 = vmatprep.subr.mxu0 0.0
    %244 = vmatpush1.msra.mxu0 %v122
    %245 = vmatprep.subr.mxu0 0.0
    %246 = vmatpush1.msra.mxu0 0.0
    %247 = vmatprep.subr.mxu0 0.0
    %248 = vmatpush1.msra.mxu0 0.0
    %249 = vmatprep.subr.mxu0 0.0
    %250 = vmatpush1.msra.mxu0 0.0
    %251 = vmatprep.subr.mxu0 0.0
    %252 = vmatpush1.msra.mxu0 0.0
    %253 = vmatprep.subr.mxu0 0.0
    %254 = vmatpush1.msra.mxu0 0.0
    %255 = vmatprep.subr.mxu0 0.0
    %256 = vmatpush1.msra.mxu0 0.0
    %257 = vmatprep.subr.mxu0 0.0
    %258 = vmatpush1.msra.mxu0 0.0
    %259 = vmatprep.subr.mxu0 0.0
    %260 = vmatpush1.msra.mxu0 0.0
    %261 = vmatprep.subr.mxu0 0.0
    %262 = vmatpush1.msra.mxu0 0.0
    %263 = vmatprep.subr.mxu0 0.0
    %264 = vmatpush1.msra.mxu0 0.0
    %265 = vmatprep.subr.mxu0 0.0
    %266 = vmatpush1.msra.mxu0 0.0
    %267 = vmatprep.subr.mxu0 0.0
    %268 = vmatpush1.msra.mxu0 0.0
    %269 = vmatprep.subr.mxu0 0.0
    %270 = vmatpush1.msra.mxu0 0.0
    %271 = vmatprep.subr.mxu0 0.0
    %272 = vmatpush1.msra.mxu0 0.0
    %273 = vmatprep.subr.mxu0 0.0
    %274 = vmatpush1.msra.mxu0 0.0
    %275 = vmatprep.subr.mxu0 0.0
    %276 = vmatpush1.msra.mxu0 0.0
    %277 = vmatprep.subr.mxu0 0.0
    %278 = vmatpush1.msra.mxu0 0.0
    %279 = vmatprep.subr.mxu0 0.0
    %280 = vmatpush1.msra.mxu0 0.0
    %281 = vmatprep.subr.mxu0 0.0
    %282 = vmatpush1.msra.mxu0 0.0
    %283 = vmatprep.subr.mxu0 0.0
    %284 = vmatpush1.msra.mxu0 0.0
    %285 = vmatprep.subr.mxu0 0.0
    %286 = vmatpush1.msra.mxu0 0.0
    %287 = vmatprep.subr.mxu0 0.0
    %288 = vmatpush1.msra.mxu0 0.0
    %289 = vmatprep.subr.mxu0 0.0
    %290 = vmatpush1.msra.mxu0 0.0
    %291 = vmatprep.subr.mxu0 0.0
    %292 = vmatpush1.msra.mxu0 0.0
    %293 = vmatprep.subr.mxu0 0.0
    %294 = vmatpush1.msra.mxu0 0.0
    %295 = vmatprep.subr.mxu0 0.0
    %296 = vmatpush1.msra.mxu0 0.0
    %297 = vmatprep.subr.mxu0 0.0
    %298 = vmatpush1.msra.mxu0 0.0
    %299 = vmatprep.subr.mxu0 0.0
    %300 = vmatpush1.msra.mxu0 0.0
    %301 = vmatprep.mubr.f32.mxu0 0.0
    %302 = vmatmul.mubr.f32.gmra.mrb[0].mxu0 %v226
    %v303 = vpop.f32.mrb[0].mxu0
    %v304 = vadd.f32 %v207, %v303
    %v305 = vpop.f32.mrb[0].mxu0
    %306 = vmatprep.mubr.f32.mxu0 0.0
    %307 = vmatmul.mubr.f32.gmra.mrb[0].mxu0 %v229
    %v308 = vpop.f32.mrb[0].mxu0
    %v309 = vadd.f32 %v212, %v308
    %v310 = vpop.f32.mrb[0].mxu0
    %311 = vmatprep.mubr.f32.mxu0 0.0
    %312 = vmatmul.mubr.f32.gmra.mrb[0].mxu0 %v232
    %v313 = vpop.f32.mrb[0].mxu0
    %v314 = vadd.f32 %v217, %v313
    %v315 = vpop.f32.mrb[0].mxu0
    %316 = vmatprep.mubr.f32.mxu0 0.0
    %317 = vmatmul.mubr.f32.gmra.mrb[0].mxu0 %v235
    %v318 = vpop.f32.mrb[0].mxu0
    %v319 = vadd.f32 %v222, %v318
    %v320 = vpop.f32.mrb[0].mxu0
    %321 = vdwg.mxu0
    %v322 = vld [vmem:[%s4] sm:$0x1]
    %v324 = vlaneseq
    %v325 = vshrl.u32 %v324, 7
    %v326 = vsub.s32 0, %v325
    %v327 = vrot.slane %v322, %v326
    %v329 = vadd.f32 %v304, %v327
    %v330 = vadd.f32 %v309, %v327
    %v331 = vadd.f32 %v314, %v327
    %v332 = vadd.f32 %v319, %v327
    %v333 = vmax.f32 %v329, 0.0
    %v334 = vmax.f32 %v330, 0.0
    %v335 = vmax.f32 %v331, 0.0
    %v336 = vmax.f32 %v332, 0.0
    %v337 = vld [vmem:[#allocation11] sm:$0xff]
    %v338 = vld [vmem:[#allocation11 + $0x8] sm:$0xff]
    %v339 = vld [vmem:[#allocation11 + $0x10] sm:$0xff]
    %v340 = vld [vmem:[#allocation11 + $0x18] sm:$0xff]
    %v341 = vld [vmem:[%s6] sm:$0x1]
    %v343 = vlaneseq
    %v344 = vshrl.u32 %v343, 7
    %v345 = vsub.s32 0, %v344
    %v346 = vrot.slane %v341, %v345
    %v349 = vsel %vm127, %v333, 0
    %v352 = vsel %vm127, %v334, 0
    %v355 = vsel %vm127, %v335, 0
    %v358 = vsel %vm127, %v336, 0
    %360 = vmatprep.subr.mxu0 0.0
    %361 = vmatpush1.msra.mxu0 %v337
    %362 = vmatprep.subr.mxu0 0.0
    %363 = vmatpush1.msra.mxu0 %v338
    %364 = vmatprep.subr.mxu0 0.0
    %365 = vmatpush1.msra.mxu0 %v339
    %366 = vmatprep.subr.mxu0 0.0
    %367 = vmatpush1.msra.mxu0 %v340
    %368 = vmatprep.subr.mxu0 0.0
    %369 = vmatpush1.msra.mxu0 0.0
    %370 = vmatprep.subr.mxu0 0.0
    %371 = vmatpush1.msra.mxu0 0.0
    %372 = vmatprep.subr.mxu0 0.0
    %373 = vmatpush1.msra.mxu0 0.0
    %374 = vmatprep.subr.mxu0 0.0
    %375 = vmatpush1.msra.mxu0 0.0
    %376 = vmatprep.subr.mxu0 0.0
    %377 = vmatpush1.msra.mxu0 0.0
    %378 = vmatprep.subr.mxu0 0.0
    %379 = vmatpush1.msra.mxu0 0.0
    %380 = vmatprep.subr.mxu0 0.0
    %381 = vmatpush1.msra.mxu0 0.0
    %382 = vmatprep.subr.mxu0 0.0
    %383 = vmatpush1.msra.mxu0 0.0
    %384 = vmatprep.subr.mxu0 0.0
    %385 = vmatpush1.msra.mxu0 0.0
    %386 = vmatprep.subr.mxu0 0.0
    %387 = vmatpush1.msra.mxu0 0.0
    %388 = vmatprep.subr.mxu0 0.0
    %389 = vmatpush1.msra.mxu0 0.0
    %390 = vmatprep.subr.mxu0 0.0
    %391 = vmatpush1.msra.mxu0 0.0
    %392 = vmatprep.subr.mxu0 0.0
    %393 = vmatpush1.msra.mxu0 0.0
    %394 = vmatprep.subr.mxu0 0.0
    %395 = vmatpush1.msra.mxu0 0.0
    %396 = vmatprep.subr.mxu0 0.0
    %397 = vmatpush1.msra.mxu0 0.0
    %398 = vmatprep.subr.mxu0 0.0
    %399 = vmatpush1.msra.mxu0 0.0
    %400 = vmatprep.subr.mxu0 0.0
    %401 = vmatpush1.msra.mxu0 0.0
    %402 = vmatprep.subr.mxu0 0.0
    %403 = vmatpush1.msra.mxu0 0.0
    %404 = vmatprep.subr.mxu0 0.0
    %405 = vmatpush1.msra.mxu0 0.0
    %406 = vmatprep.subr.mxu0 0.0
    %407 = vmatpush1.msra.mxu0 0.0
    %408 = vmatprep.subr.mxu0 0.0
    %409 = vmatpush1.msra.mxu0 0.0
    %410 = vmatprep.subr.mxu0 0.0
    %411 = vmatpush1.msra.mxu0 0.0
    %412 = vmatprep.subr.mxu0 0.0
    %413 = vmatpush1.msra.mxu0 0.0
    %414 = vmatprep.subr.mxu0 0.0
    %415 = vmatpush1.msra.mxu0 0.0
    %416 = vmatprep.subr.mxu0 0.0
    %417 = vmatpush1.msra.mxu0 0.0
    %418 = vmatprep.subr.mxu0 0.0
    %419 = vmatpush1.msra.mxu0 0.0
    %420 = vmatprep.subr.mxu0 0.0
    %421 = vmatpush1.msra.mxu0 0.0
    %422 = vmatprep.subr.mxu0 0.0
    %423 = vmatpush1.msra.mxu0 0.0
    %424 = vmatprep.mubr.f32.mxu0 0.0
    %425 = vmatmul.mubr.f32.gmra.mrb[0].mxu0 %v349
    %v426 = vpop.f32.mrb[0].mxu0
    %v427 = vadd.f32 %v346, %v426
    %v428 = vpop.f32.mrb[0].mxu0
    %429 = vmatprep.mubr.f32.mxu0 0.0
    %430 = vmatmul.mubr.f32.gmra.mrb[0].mxu0 %v352
    %v431 = vpop.f32.mrb[0].mxu0
    %v432 = vadd.f32 %v346, %v431
    %v433 = vpop.f32.mrb[0].mxu0
    %434 = vmatprep.mubr.f32.mxu0 0.0
    %435 = vmatmul.mubr.f32.gmra.mrb[0].mxu0 %v355
    %v436 = vpop.f32.mrb[0].mxu0
    %v437 = vadd.f32 %v346, %v436
    %v438 = vpop.f32.mrb[0].mxu0
    %439 = vmatprep.mubr.f32.mxu0 0.0
    %440 = vmatmul.mubr.f32.gmra.mrb[0].mxu0 %v358
    %v441 = vpop.f32.mrb[0].mxu0
    %v442 = vadd.f32 %v346, %v441
    %v443 = vpop.f32.mrb[0].mxu0
    %444 = vdwg.mxu0
    %v445 = vmax.f32 %v427, 0.0
    %v446 = vmax.f32 %v432, 0.0
    %v447 = vmax.f32 %v437, 0.0
    %v448 = vmax.f32 %v442, 0.0
    %v449 = vld [vmem:[%s7] sm:$0x1]
    %v450 = vld [vmem:[#allocation2] sm:$0x1]
    %452 = vset.pattern.permute.xlu0 0
    %453 = vperm.xlu0 %452, %v450
    %v454 = vpop.permute.xlu0 %453
    %v456 = vlaneseq
    %v457 = vshrl.u32 %v456, 7
    %v458 = vsub.s32 0, %v457
    %v459 = vrot.slane %v454, %v458
    %v461 = vsel %vm127, %v449, 0
    %v464 = vsel %vm127, %v445, 0
    %v467 = vsel %vm127, %v446, 0
    %v470 = vsel %vm127, %v447, 0
    %v473 = vsel %vm127, %v448, 0
    %475 = vmatprep.subr.mxu0 0.0
    %476 = vmatpush1.xpose.msra.mxu0 %v464
    %477 = vmatprep.subr.mxu0 0.0
    %478 = vmatpush1.xpose.msra.mxu0 %v467
    %479 = vmatprep.subr.mxu0 0.0
    %480 = vmatpush1.xpose.msra.mxu0 %v470
    %481 = vmatprep.subr.mxu0 0.0
    %482 = vmatpush1.xpose.msra.mxu0 %v473
    %483 = vmatprep.subr.mxu0 0.0
    %484 = vmatpush1.xpose.msra.mxu0 0.0
    %485 = vmatprep.subr.mxu0 0.0
    %486 = vmatpush1.xpose.msra.mxu0 0.0
    %487 = vmatprep.subr.mxu0 0.0
    %488 = vmatpush1.xpose.msra.mxu0 0.0
    %489 = vmatprep.subr.mxu0 0.0
    %490 = vmatpush1.xpose.msra.mxu0 0.0
    %491 = vmatprep.subr.mxu0 0.0
    %492 = vmatpush1.xpose.msra.mxu0 0.0
    %493 = vmatprep.subr.mxu0 0.0
    %494 = vmatpush1.xpose.msra.mxu0 0.0
    %495 = vmatprep.subr.mxu0 0.0
    %496 = vmatpush1.xpose.msra.mxu0 0.0
    %497 = vmatprep.subr.mxu0 0.0
    %498 = vmatpush1.xpose.msra.mxu0 0.0
    %499 = vmatprep.subr.mxu0 0.0
    %500 = vmatpush1.xpose.msra.mxu0 0.0
    %501 = vmatprep.subr.mxu0 0.0
    %502 = vmatpush1.xpose.msra.mxu0 0.0
    %503 = vmatprep.subr.mxu0 0.0
    %504 = vmatpush1.xpose.msra.mxu0 0.0
    %505 = vmatprep.subr.mxu0 0.0
    %506 = vmatpush1.xpose.msra.mxu0 0.0
    %507 = vmatprep.subr.mxu0 0.0
    %508 = vmatpush1.xpose.msra.mxu0 0.0
    %509 = vmatprep.subr.mxu0 0.0
    %510 = vmatpush1.xpose.msra.mxu0 0.0
    %511 = vmatprep.subr.mxu0 0.0
    %512 = vmatpush1.xpose.msra.mxu0 0.0
    %513 = vmatprep.subr.mxu0 0.0
    %514 = vmatpush1.xpose.msra.mxu0 0.0
    %515 = vmatprep.subr.mxu0 0.0
    %516 = vmatpush1.xpose.msra.mxu0 0.0
    %517 = vmatprep.subr.mxu0 0.0
    %518 = vmatpush1.xpose.msra.mxu0 0.0
    %519 = vmatprep.subr.mxu0 0.0
    %520 = vmatpush1.xpose.msra.mxu0 0.0
    %521 = vmatprep.subr.mxu0 0.0
    %522 = vmatpush1.xpose.msra.mxu0 0.0
    %523 = vmatprep.subr.mxu0 0.0
    %524 = vmatpush1.xpose.msra.mxu0 0.0
    %525 = vmatprep.subr.mxu0 0.0
    %526 = vmatpush1.xpose.msra.mxu0 0.0
    %527 = vmatprep.subr.mxu0 0.0
    %528 = vmatpush1.xpose.msra.mxu0 0.0
    %529 = vmatprep.subr.mxu0 0.0
    %530 = vmatpush1.xpose.msra.mxu0 0.0
    %531 = vmatprep.subr.mxu0 0.0
    %532 = vmatpush1.xpose.msra.mxu0 0.0
    %533 = vmatprep.subr.mxu0 0.0
    %534 = vmatpush1.xpose.msra.mxu0 0.0
    %535 = vmatprep.subr.mxu0 0.0
    %536 = vmatpush1.xpose.msra.mxu0 0.0
    %537 = vmatprep.subr.mxu0 0.0
    %538 = vmatpush1.xpose.msra.mxu0 0.0
    %539 = vmatprep.mubr.f32.mxu0 0.0
    %540 = vmatmul.mubr.f32.gmra.mrb[0].mxu0 %v461
    %v541 = vpop.f32.mrb[0].mxu0
    %v542 = vadd.f32 %v459, %v541
    %v543 = vpop.f32.mrb[0].mxu0
    %544 = vdwg.mxu0
    %vm545 = vcmask 253952
    %546 = vst.msk [vmem:[#allocation12] sm:$0x1] %vm545, %v542
    // Predicated region
    $region58: #{tpu_custom_call.1} parent=1 // pred_check
      _
    $region59: #{tpu_custom_call.1} parent=1 // pred_check_branch
      %548 = sbr.rel (0) target = $region61
    $region60: #{tpu_custom_call.1} parent=1 // pred_region
      %s550 = ssub.s32 16, 16
      %551 = vsyncadd [#allocation5], %s550
      %s553 = sshll.u32 [#allocation12], 4
      %s554 = int_to_ptr.vmem [resolvable:$true] %s553
      %556 = dma.vmem_to_hbm [thread:$0]  %s554, 16, %s9, [#allocation5]
    $region61: #{tpu_custom_call.1} parent=1 // pred_fallthru
      _
    // Predicated region
    $region62: #{tpu_custom_call.1} parent=1 // pred_check
      _
    $region63: #{tpu_custom_call.1} parent=1 // pred_check_branch
      %558 = sbr.rel (0) target = $region65
    $region64: #{tpu_custom_call.1} parent=1 // pred_region
      %559 = dma.done [#allocation5], 16
    $region65: #{tpu_custom_call.1} parent=1 // pred_fallthru
      _
    %560 = vsyncpa [#allocation4], 1
    %561 = vsyncpa [#allocation7], 1
    %562 = vsyncpa [#allocation10], 1
    %563 = vsyncpa [#allocation5], 1

</llo_original>
